<compile_context>
chip_gen: v7x
topology: tpu7x:2x2x1
jax: 0.10.0
libtpu: 0.0.40
codegen_flags: <defaults>
</compile_context>

<pallas_src>
import jax
import jax.numpy as jnp
from jax.experimental import pallas as pl
from jax.experimental.pallas import tpu as pltpu

VMEM_SPEC = pl.BlockSpec(memory_space=pltpu.MemorySpace.VMEM)
SMEM_SPEC = pl.BlockSpec(memory_space=pltpu.MemorySpace.SMEM)

B_PAD = 8        # batch padded to a full sublane tile for the per-batch tail
OUT_LANES = 128  # lane-dense output slab width


# ------------------------------ fused kernel -------------------------------


def _fused_forward_kernel(p1_ref, p2_ref, xm_ref, bp_ref, pool1_ref, pool2_ref,
                          w1_ref, b1_ref, w2_ref, b2_ref,
                          wh1_ref, wh2_ref, wm1_ref, bm1_ref, wm2_ref,
                          scal_ref, o_ref):
    """Entire MultiModal forward in a single kernel.

    p1_ref   : [K1*Cin, B*L ]   im2col'd SMILES patches (channels-major)
    p2_ref   : [K2*Cin, B*HW]   im2col'd 2-D patches (channels-major)
    xm_ref   : [B_PAD, F]       concat(md, fp, maccs, col), batch-padded
    bp_ref   : [B_PAD, 1]       boost_pred, batch-padded
    pool*    : [B_PAD, B*S]     mean-pool matrices (zero rows for pad batches)
    w1/w2    : [Cout, K*Cin]    flattened conv weights;  b1/b2: [Cout, 1]
    wh1/wh2  : [1, Cout]        conv head weights (row vectors)
    wm1      : [F, H]; bm1: [1, H]; wm2: [1, H]
    scal_ref : SMEM f32[8] = [w_fc0..3, b_fc, b_h1, b_h2, b_m2]
    o_ref    : [B_PAD, 128]     result broadcast over lanes
    """
    f32 = jnp.float32

    # --- CNN1D branch: conv + bias + ReLU in lane-dense channels-major layout.
    act1 = jnp.maximum(
        jnp.dot(w1_ref[...], p1_ref[...], preferred_element_type=f32)
        + b1_ref[...], 0.0)                                        # [C1, B*L]
    pooled1 = jnp.einsum('bs,cs->bc', pool1_ref[...], act1,
                         preferred_element_type=f32)               # [B_PAD, C1]
    x1 = jnp.sum(pooled1 * wh1_ref[...], axis=-1, keepdims=True) + scal_ref[5]

    # --- CNN2D branch.
    act2 = jnp.maximum(
        jnp.dot(w2_ref[...], p2_ref[...], preferred_element_type=f32)
        + b2_ref[...], 0.0)                                        # [C2, B*HW]
    pooled2 = jnp.einsum('bs,cs->bc', pool2_ref[...], act2,
                         preferred_element_type=f32)               # [B_PAD, C2]
    x2 = jnp.sum(pooled2 * wh2_ref[...], axis=-1, keepdims=True) + scal_ref[6]

    # --- MLP branch.
    hm = jnp.maximum(
        jnp.dot(xm_ref[...], wm1_ref[...], preferred_element_type=f32)
        + bm1_ref[...], 0.0)                                       # [B_PAD, H]
    x3 = jnp.sum(hm * wm2_ref[...], axis=-1, keepdims=True) + scal_ref[7]

    # --- boosted prediction passthrough (as in the module).
    x4 = bp_ref[...]                                               # [B_PAD, 1]

    # --- fusion head: concat -> Linear(4, 1) -> ReLU, as VPU multiply-adds.
    y = (scal_ref[0] * x1 + scal_ref[1] * x2 + scal_ref[2] * x3
         + scal_ref[3] * x4 + scal_ref[4])
    y = jnp.maximum(y, 0.0)                                        # [B_PAD, 1]

    # Lane-dense writeback: one unmasked (8, 128) store.
    o_ref[...] = jnp.broadcast_to(y, o_ref.shape).astype(o_ref.dtype)


# ----------------------- wrapper-side (one-time) plumbing -------------------


def _im2col1d_t(x_nlc, K):
    """[B, L, Cin] -> transposed patches [K*Cin, B*L]; row order (k, cin)."""
    B, L, Cin = x_nlc.shape
    pad = (K - 1) // 2
    xp = jnp.pad(x_nlc, ((0, 0), (pad, pad), (0, 0)))
    cols = jnp.stack([xp[:, k:k + L, :] for k in range(K)], axis=2)  # [B,L,K,Cin]
    return cols.reshape(B * L, K * Cin).T


def _im2col2d_t(x_nhwc, KH, KW):
    """[B, H, W, Cin] -> transposed patches [KH*KW*Cin, B*H*W]; rows (kh,kw,cin)."""
    B, H, W, Cin = x_nhwc.shape
    ph, pw = (KH - 1) // 2, (KW - 1) // 2
    xp = jnp.pad(x_nhwc, ((0, 0), (ph, ph), (pw, pw), (0, 0)))
    cols = jnp.stack([xp[:, kh:kh + H, kw:kw + W, :]
                      for kh in range(KH) for kw in range(KW)], axis=3)
    return cols.reshape(B * H * W, KH * KW * Cin).T


def _pool_matrix(B, S):
    """[B_PAD, B*S] mean-pool matrix; zero rows for padded batch entries."""
    b_idx = jnp.arange(B_PAD)[:, None]
    s_idx = jnp.arange(B * S)[None, :] // S
    return jnp.where((b_idx == s_idx) & (b_idx < B),
                     jnp.float32(1.0 / S), jnp.float32(0.0))


@jax.jit
def multimodal_forward(smiles_ncl, twod_nchw, md, maccs, fp, col, boost_pred,
                       params):
    B = smiles_ncl.shape[0]

    # PyTorch NCL / NCHW -> channels-last, then im2col (executed once by XLA).
    smiles_nlc = jnp.transpose(smiles_ncl, (0, 2, 1))
    twod_nhwc = jnp.transpose(twod_nchw, (0, 2, 3, 1))

    K1, Cin1, C1 = params["w_c1"].shape
    KH, KW, Cin2, C2 = params["w_c2"].shape
    L = smiles_nlc.shape[1]
    H, W = twod_nhwc.shape[1:3]

    p1t = _im2col1d_t(smiles_nlc, K1)                       # [K1*Cin1, B*L]
    p2t = _im2col2d_t(twod_nhwc, KH, KW)                    # [KH*KW*Cin2, B*H*W]

    # Kernel-friendly parameter layouts (channels-major conv weights, row-vec heads).
    w1_cf = params["w_c1"].reshape(K1 * Cin1, C1).T         # [C1, K1*Cin1]
    b1_col = params["b_c1"].reshape(C1, 1)
    w2_cf = params["w_c2"].reshape(KH * KW * Cin2, C2).T    # [C2, KH*KW*Cin2]
    b2_col = params["b_c2"].reshape(C2, 1)
    wh1_row = params["w_h1"].reshape(1, C1)
    wh2_row = params["w_h2"].reshape(1, C2)
    wm2_row = params["w_m2"].reshape(1, -1)

    pool1 = _pool_matrix(B, L)                              # [B_PAD, B*L]
    pool2 = _pool_matrix(B, H * W)                          # [B_PAD, B*H*W]

    xm = jnp.concatenate([md, fp, maccs, col], axis=1)      # [B, F]
    xm_pad = jnp.pad(xm, ((0, B_PAD - B), (0, 0)))
    bp_pad = jnp.pad(boost_pred, ((0, B_PAD - B), (0, 0)))

    scal = jnp.concatenate([
        params["w_fc"].reshape(-1),      # [0:4]  fusion-head weights
        params["b_fc"].reshape(-1),      # [4]    fusion-head bias
        params["b_h1"].reshape(-1),      # [5]    conv1d head bias
        params["b_h2"].reshape(-1),      # [6]    conv2d head bias
        params["b_m2"].reshape(-1),      # [7]    mlp output bias
    ]).astype(jnp.float32)

    # ---- single fused kernel launch ----
    out_slab = pl.pallas_call(
        _fused_forward_kernel,
        out_shape=jax.ShapeDtypeStruct((B_PAD, OUT_LANES), jnp.float32),
        in_specs=[VMEM_SPEC] * 15 + [SMEM_SPEC],
        out_specs=VMEM_SPEC,
    )(p1t, p2t, xm_pad, bp_pad, pool1, pool2,
      w1_cf, b1_col, w2_cf, b2_col,
      wh1_row, wh2_row, params["w_m1"], params["b_m1"], wm2_row,
      scal)

    return out_slab[:B, :1]


# --------------------------------- Driver -----------------------------------


if __name__ == "__main__":
    B = 2
    key = jax.random.PRNGKey(0)
    ks = jax.random.split(key, 16)

    # Inputs (PyTorch-style layouts for the raw tensors).
    smiles = jax.random.normal(ks[0], (B, 4, 16), jnp.float32)       # NCL
    twod = jax.random.normal(ks[1], (B, 4, 16, 16), jnp.float32)     # NCHW
    md = jax.random.normal(ks[2], (B, 16), jnp.float32)
    maccs = jax.random.normal(ks[3], (B, 16), jnp.float32)
    fp = jax.random.normal(ks[4], (B, 32), jnp.float32)
    col = jax.random.normal(ks[5], (B, 1), jnp.float32)
    boost_pred = jax.random.normal(ks[6], (B, 1), jnp.float32)

    # Deterministic parameters (stand-in submodules; fusion head exact).
    params = {
        # CNN1D stand-in: Conv1d(4 -> 8, k=3, pad=1) + head Linear(8 -> 1)
        "w_c1": 0.1 * jax.random.normal(ks[7], (3, 4, 8), jnp.float32),
        "b_c1": jnp.zeros((1, 8), jnp.float32),
        "w_h1": 0.1 * jax.random.normal(ks[8], (8, 1), jnp.float32),
        "b_h1": jnp.zeros((1, 1), jnp.float32),
        # CNN2D stand-in: Conv2d(4 -> 8, 3x3, pad=1) + head Linear(8 -> 1)
        "w_c2": 0.1 * jax.random.normal(ks[9], (3, 3, 4, 8), jnp.float32),
        "b_c2": jnp.zeros((1, 8), jnp.float32),
        "w_h2": 0.1 * jax.random.normal(ks[10], (8, 1), jnp.float32),
        "b_h2": jnp.zeros((1, 1), jnp.float32),
        # MLP stand-in: Linear(16+32+16+1=65 -> 32) + ReLU + Linear(32 -> 1)
        "w_m1": 0.1 * jax.random.normal(ks[11], (65, 32), jnp.float32),
        "b_m1": jnp.zeros((1, 32), jnp.float32),
        "w_m2": 0.1 * jax.random.normal(ks[12], (32, 1), jnp.float32),
        "b_m2": jnp.zeros((1, 1), jnp.float32),
        # Fusion head: Linear(4 -> 1) + ReLU (exact match to the module)
        "w_fc": 0.1 * jax.random.normal(ks[13], (4, 1), jnp.float32),
        "b_fc": jnp.zeros((1, 1), jnp.float32),
    }

    out = multimodal_forward(smiles, twod, md, maccs, fp, col, boost_pred,
                             params)
    jax.block_until_ready(out)
    assert out.shape == (B, 1) and out.dtype == jnp.float32
    assert bool(jnp.all(out >= 0.0))  # final ReLU
    print("KERNEL_OK")
</pallas_src>

<mosaic_0001>
module attributes {stable_mosaic.version = 11 : i64} {
  func.func @_fused_forward_kernel(%arg0: memref<12x32xf32, #tpu.memory_space<vmem>>, %arg1: memref<36x512xf32, #tpu.memory_space<vmem>>, %arg2: memref<8x65xf32, #tpu.memory_space<vmem>>, %arg3: memref<8x1xf32, #tpu.memory_space<vmem>>, %arg4: memref<8x32xf32, #tpu.memory_space<vmem>>, %arg5: memref<8x512xf32, #tpu.memory_space<vmem>>, %arg6: memref<8x12xf32, #tpu.memory_space<vmem>>, %arg7: memref<8x1xf32, #tpu.memory_space<vmem>>, %arg8: memref<8x36xf32, #tpu.memory_space<vmem>>, %arg9: memref<8x1xf32, #tpu.memory_space<vmem>>, %arg10: memref<1x8xf32, #tpu.memory_space<vmem>>, %arg11: memref<1x8xf32, #tpu.memory_space<vmem>>, %arg12: memref<65x32xf32, #tpu.memory_space<vmem>>, %arg13: memref<1x32xf32, #tpu.memory_space<vmem>>, %arg14: memref<1x32xf32, #tpu.memory_space<vmem>>, %arg15: memref<8xf32, #tpu.memory_space<smem>>, %arg16: memref<8x128xf32, #tpu.memory_space<vmem>>) attributes {dimension_semantics = [], scalar_prefetch = 0 : i64, scratch_operands = 0 : i64, tpu.core_type = #tpu.core_type<tc>} {
    %c0 = arith.constant 0 : index
    %c0_0 = arith.constant 0 : index
    %0 = vector.load %arg6[%c0, %c0_0] : memref<8x12xf32, #tpu.memory_space<vmem>>, vector<8x12xf32>
    %c0_1 = arith.constant 0 : index
    %c0_2 = arith.constant 0 : index
    %1 = vector.load %arg0[%c0_1, %c0_2] : memref<12x32xf32, #tpu.memory_space<vmem>>, vector<12x32xf32>
    %cst = arith.constant dense<0.000000e+00> : vector<8x32xf32>
    %2 = tpu.matmul %0, %1, %cst {dimension_numbers = #tpu.dot_dimension_numbers<[1], [0], [0], [1], [0, 0, 1, 1], [], []>} : vector<8x12xf32>, vector<12x32xf32>, vector<8x32xf32> -> vector<8x32xf32>
    %c0_3 = arith.constant 0 : index
    %c0_4 = arith.constant 0 : index
    %3 = vector.load %arg7[%c0_3, %c0_4] : memref<8x1xf32, #tpu.memory_space<vmem>>, vector<8x1xf32>
    %4 = vector.broadcast %3 : vector<8x1xf32> to vector<8x32xf32>
    %5 = arith.addf %2, %4 : vector<8x32xf32>
    %cst_5 = arith.constant 0.000000e+00 : f32
    %6 = vector.broadcast %cst_5 : f32 to vector<8x32xf32>
    %7 = arith.maximumf %5, %6 : vector<8x32xf32>
    %c0_6 = arith.constant 0 : index
    %c0_7 = arith.constant 0 : index
    %8 = vector.load %arg4[%c0_6, %c0_7] : memref<8x32xf32, #tpu.memory_space<vmem>>, vector<8x32xf32>
    "tpu.trace_start"() <{level = 10 : i32, message = "bs,cs->bc"}> : () -> ()
    %cst_8 = arith.constant dense<0.000000e+00> : vector<8x8xf32>
    %9 = tpu.matmul %8, %7, %cst_8 {dimension_numbers = #tpu.dot_dimension_numbers<[1], [1], [0], [0], [0, 0, 1, 0], [], []>} : vector<8x32xf32>, vector<8x32xf32>, vector<8x8xf32> -> vector<8x8xf32>
    "tpu.trace_stop"() : () -> ()
    %c0_9 = arith.constant 0 : index
    %c0_10 = arith.constant 0 : index
    %10 = vector.load %arg10[%c0_9, %c0_10] : memref<1x8xf32, #tpu.memory_space<vmem>>, vector<1x8xf32>
    %11 = vector.broadcast %10 : vector<1x8xf32> to vector<8x8xf32>
    %12 = arith.mulf %9, %11 : vector<8x8xf32>
    %cst_11 = arith.constant dense<0.000000e+00> : vector<8xf32>
    %13 = vector.multi_reduction <add>, %12, %cst_11 [1] : vector<8x8xf32> to vector<8xf32>
    %14 = vector.shape_cast %13 : vector<8xf32> to vector<8x1xf32>
    %c5 = arith.constant 5 : index
    %15 = memref.load %arg15[%c5] : memref<8xf32, #tpu.memory_space<smem>>
    %16 = vector.broadcast %15 : f32 to vector<8x1xf32>
    %17 = arith.addf %14, %16 : vector<8x1xf32>
    %c0_12 = arith.constant 0 : index
    %c0_13 = arith.constant 0 : index
    %18 = vector.load %arg8[%c0_12, %c0_13] : memref<8x36xf32, #tpu.memory_space<vmem>>, vector<8x36xf32>
    %c0_14 = arith.constant 0 : index
    %c0_15 = arith.constant 0 : index
    %19 = vector.load %arg1[%c0_14, %c0_15] : memref<36x512xf32, #tpu.memory_space<vmem>>, vector<36x512xf32>
    %cst_16 = arith.constant dense<0.000000e+00> : vector<8x512xf32>
    %20 = tpu.matmul %18, %19, %cst_16 {dimension_numbers = #tpu.dot_dimension_numbers<[1], [0], [0], [1], [0, 0, 1, 1], [], []>} : vector<8x36xf32>, vector<36x512xf32>, vector<8x512xf32> -> vector<8x512xf32>
    %c0_17 = arith.constant 0 : index
    %c0_18 = arith.constant 0 : index
    %21 = vector.load %arg9[%c0_17, %c0_18] : memref<8x1xf32, #tpu.memory_space<vmem>>, vector<8x1xf32>
    %22 = vector.broadcast %21 : vector<8x1xf32> to vector<8x512xf32>
    %23 = arith.addf %20, %22 : vector<8x512xf32>
    %cst_19 = arith.constant 0.000000e+00 : f32
    %24 = vector.broadcast %cst_19 : f32 to vector<8x512xf32>
    %25 = arith.maximumf %23, %24 : vector<8x512xf32>
    %c0_20 = arith.constant 0 : index
    %c0_21 = arith.constant 0 : index
    %26 = vector.load %arg5[%c0_20, %c0_21] : memref<8x512xf32, #tpu.memory_space<vmem>>, vector<8x512xf32>
    "tpu.trace_start"() <{level = 10 : i32, message = "bs,cs->bc"}> : () -> ()
    %cst_22 = arith.constant dense<0.000000e+00> : vector<8x8xf32>
    %27 = tpu.matmul %26, %25, %cst_22 {dimension_numbers = #tpu.dot_dimension_numbers<[1], [1], [0], [0], [0, 0, 1, 0], [], []>} : vector<8x512xf32>, vector<8x512xf32>, vector<8x8xf32> -> vector<8x8xf32>
    "tpu.trace_stop"() : () -> ()
    %c0_23 = arith.constant 0 : index
    %c0_24 = arith.constant 0 : index
    %28 = vector.load %arg11[%c0_23, %c0_24] : memref<1x8xf32, #tpu.memory_space<vmem>>, vector<1x8xf32>
    %29 = vector.broadcast %28 : vector<1x8xf32> to vector<8x8xf32>
    %30 = arith.mulf %27, %29 : vector<8x8xf32>
    %cst_25 = arith.constant dense<0.000000e+00> : vector<8xf32>
    %31 = vector.multi_reduction <add>, %30, %cst_25 [1] : vector<8x8xf32> to vector<8xf32>
    %32 = vector.shape_cast %31 : vector<8xf32> to vector<8x1xf32>
    %c6 = arith.constant 6 : index
    %33 = memref.load %arg15[%c6] : memref<8xf32, #tpu.memory_space<smem>>
    %34 = vector.broadcast %33 : f32 to vector<8x1xf32>
    %35 = arith.addf %32, %34 : vector<8x1xf32>
    %c0_26 = arith.constant 0 : index
    %c0_27 = arith.constant 0 : index
    %36 = vector.load %arg2[%c0_26, %c0_27] : memref<8x65xf32, #tpu.memory_space<vmem>>, vector<8x65xf32>
    %c0_28 = arith.constant 0 : index
    %c0_29 = arith.constant 0 : index
    %37 = vector.load %arg12[%c0_28, %c0_29] : memref<65x32xf32, #tpu.memory_space<vmem>>, vector<65x32xf32>
    %cst_30 = arith.constant dense<0.000000e+00> : vector<8x32xf32>
    %38 = tpu.matmul %36, %37, %cst_30 {dimension_numbers = #tpu.dot_dimension_numbers<[1], [0], [0], [1], [0, 0, 1, 1], [], []>} : vector<8x65xf32>, vector<65x32xf32>, vector<8x32xf32> -> vector<8x32xf32>
    %c0_31 = arith.constant 0 : index
    %c0_32 = arith.constant 0 : index
    %39 = vector.load %arg13[%c0_31, %c0_32] : memref<1x32xf32, #tpu.memory_space<vmem>>, vector<1x32xf32>
    %40 = vector.broadcast %39 : vector<1x32xf32> to vector<8x32xf32>
    %41 = arith.addf %38, %40 : vector<8x32xf32>
    %cst_33 = arith.constant 0.000000e+00 : f32
    %42 = vector.broadcast %cst_33 : f32 to vector<8x32xf32>
    %43 = arith.maximumf %41, %42 : vector<8x32xf32>
    %c0_34 = arith.constant 0 : index
    %c0_35 = arith.constant 0 : index
    %44 = vector.load %arg14[%c0_34, %c0_35] : memref<1x32xf32, #tpu.memory_space<vmem>>, vector<1x32xf32>
    %45 = vector.broadcast %44 : vector<1x32xf32> to vector<8x32xf32>
    %46 = arith.mulf %43, %45 : vector<8x32xf32>
    %cst_36 = arith.constant dense<0.000000e+00> : vector<8xf32>
    %47 = vector.multi_reduction <add>, %46, %cst_36 [1] : vector<8x32xf32> to vector<8xf32>
    %48 = vector.shape_cast %47 : vector<8xf32> to vector<8x1xf32>
    %c7 = arith.constant 7 : index
    %49 = memref.load %arg15[%c7] : memref<8xf32, #tpu.memory_space<smem>>
    %50 = vector.broadcast %49 : f32 to vector<8x1xf32>
    %51 = arith.addf %48, %50 : vector<8x1xf32>
    %c0_37 = arith.constant 0 : index
    %c0_38 = arith.constant 0 : index
    %52 = vector.load %arg3[%c0_37, %c0_38] : memref<8x1xf32, #tpu.memory_space<vmem>>, vector<8x1xf32>
    %c0_39 = arith.constant 0 : index
    %53 = memref.load %arg15[%c0_39] : memref<8xf32, #tpu.memory_space<smem>>
    %54 = vector.broadcast %53 : f32 to vector<8x1xf32>
    %55 = arith.mulf %54, %17 : vector<8x1xf32>
    %c1 = arith.constant 1 : index
    %56 = memref.load %arg15[%c1] : memref<8xf32, #tpu.memory_space<smem>>
    %57 = vector.broadcast %56 : f32 to vector<8x1xf32>
    %58 = arith.mulf %57, %35 : vector<8x1xf32>
    %59 = arith.addf %55, %58 : vector<8x1xf32>
    %c2 = arith.constant 2 : index
    %60 = memref.load %arg15[%c2] : memref<8xf32, #tpu.memory_space<smem>>
    %61 = vector.broadcast %60 : f32 to vector<8x1xf32>
    %62 = arith.mulf %61, %51 : vector<8x1xf32>
    %63 = arith.addf %59, %62 : vector<8x1xf32>
    %c3 = arith.constant 3 : index
    %64 = memref.load %arg15[%c3] : memref<8xf32, #tpu.memory_space<smem>>
    %65 = vector.broadcast %64 : f32 to vector<8x1xf32>
    %66 = arith.mulf %65, %52 : vector<8x1xf32>
    %67 = arith.addf %63, %66 : vector<8x1xf32>
    %c4 = arith.constant 4 : index
    %68 = memref.load %arg15[%c4] : memref<8xf32, #tpu.memory_space<smem>>
    %69 = vector.broadcast %68 : f32 to vector<8x1xf32>
    %70 = arith.addf %67, %69 : vector<8x1xf32>
    %cst_40 = arith.constant 0.000000e+00 : f32
    %71 = vector.broadcast %cst_40 : f32 to vector<8x1xf32>
    %72 = arith.maximumf %70, %71 : vector<8x1xf32>
    %73 = vector.shape_cast %72 : vector<8x1xf32> to vector<8x1xf32>
    %74 = vector.broadcast %73 : vector<8x1xf32> to vector<8x128xf32>
    %c0_41 = arith.constant 0 : index
    %c0_42 = arith.constant 0 : index
    %75 = vector.load %arg16[%c0_41, %c0_42] : memref<8x128xf32, #tpu.memory_space<vmem>>, vector<8x128xf32>
    tpu.vector_store %arg16[%c0_41, %c0_42], %74 {strides = array<i32>} : memref<8x128xf32, #tpu.memory_space<vmem>>, vector<8x128xf32>,
    return
  }
}

</mosaic_0001>

<llo_original>
// kernel: multimodal_forward.1
$region0: #{multimodal_forward.1}
  #allocation0 [shape = 'u32[]', space=smem, size = 0x4, offset = 0x4, fixed_abs, tag = 'smem constant byte address 0x4 - core index']
  #allocation1 [shape = 'u32[144,128]{1,0:T(1,128)}', space=vmem, size = 0x12000, scoped, tag = 'internal scratch']
  %s0 = inlined_call_operand.vmem [shape: f32[12,32], index: 0, kind: input, shape index: {}]
  %s1 = inlined_call_operand.vmem [shape: f32[36,512], index: 1, kind: input, shape index: {}]
  %s2 = inlined_call_operand.vmem [shape: f32[8,65], index: 2, kind: input, shape index: {}]
  %s3 = inlined_call_operand.vmem [shape: f32[8,1], index: 3, kind: input, shape index: {}]
  %s4 = inlined_call_operand.vmem [shape: f32[8,32], index: 4, kind: input, shape index: {}]
  %s5 = inlined_call_operand.vmem [shape: f32[8,512], index: 5, kind: input, shape index: {}]
  %s6 = inlined_call_operand.vmem [shape: f32[8,12], index: 6, kind: input, shape index: {}]
  %s7 = inlined_call_operand.vmem [shape: f32[8,1], index: 7, kind: input, shape index: {}]
  %s8 = inlined_call_operand.vmem [shape: f32[8,36], index: 8, kind: input, shape index: {}]
  %s9 = inlined_call_operand.vmem [shape: f32[8,1], index: 9, kind: input, shape index: {}]
  %s10 = inlined_call_operand.vmem [shape: f32[1,8], index: 10, kind: input, shape index: {}]
  %s11 = inlined_call_operand.vmem [shape: f32[1,8], index: 11, kind: input, shape index: {}]
  %s12 = inlined_call_operand.vmem [shape: f32[65,32], index: 12, kind: input, shape index: {}]
  %s13 = inlined_call_operand.vmem [shape: f32[1,32], index: 13, kind: input, shape index: {}]
  %s14 = inlined_call_operand.vmem [shape: f32[1,32], index: 14, kind: input, shape index: {}]
  %s15 = inlined_call_operand.vmem [shape: f32[8], index: 15, kind: input, shape index: {}]
  %s16 = inlined_call_operand.vmem [shape: f32[8,128], index: 16, kind: output, shape index: {}]
  %s17 = sld [smem:[#allocation0]]
  $region78: #{multimodal_forward.1} parent=0
    _
  %s19 = ssub.s32 1, %s17
  %s20 = scalar_select 0, %s19, %s17
  $region1: #{multimodal_forward.1} parent=0
    #allocation2 [shape = 'u8[512]{0}', space=smem, size = 0x200, scoped, tag = 'input window, operand 15, single buffered']
    #allocation3 [shape = 's32[1]{0}', space=sflag, size = 0x4, scoped, tag = 'scoped memory for multimodal_forward.1']
    %21 = vsyncpa [#allocation3], 0
    // Predicated region
    $region2: #{multimodal_forward.1} parent=1 // pred_check
      _
    $region3: #{multimodal_forward.1} parent=1 // pred_check_branch
      %23 = sbr.rel (0) target = $region5
    $region4: #{multimodal_forward.1} parent=1 // pred_region
      _
    $region5: #{multimodal_forward.1} parent=1 // pred_fallthru
      _
    // Predicated region
    $region6: #{multimodal_forward.1} parent=1 // pred_check
      _
    $region7: #{multimodal_forward.1} parent=1 // pred_check_branch
      %25 = sbr.rel (0) target = $region9
    $region8: #{multimodal_forward.1} parent=1 // pred_region
      _
    $region9: #{multimodal_forward.1} parent=1 // pred_fallthru
      _
    // Predicated region
    $region10: #{multimodal_forward.1} parent=1 // pred_check
      _
    $region11: #{multimodal_forward.1} parent=1 // pred_check_branch
      %27 = sbr.rel (0) target = $region13
    $region12: #{multimodal_forward.1} parent=1 // pred_region
      _
    $region13: #{multimodal_forward.1} parent=1 // pred_fallthru
      _
    // Predicated region
    $region14: #{multimodal_forward.1} parent=1 // pred_check
      _
    $region15: #{multimodal_forward.1} parent=1 // pred_check_branch
      %29 = sbr.rel (0) target = $region17
    $region16: #{multimodal_forward.1} parent=1 // pred_region
      _
    $region17: #{multimodal_forward.1} parent=1 // pred_fallthru
      _
    // Predicated region
    $region18: #{multimodal_forward.1} parent=1 // pred_check
      _
    $region19: #{multimodal_forward.1} parent=1 // pred_check_branch
      %31 = sbr.rel (0) target = $region21
    $region20: #{multimodal_forward.1} parent=1 // pred_region
      _
    $region21: #{multimodal_forward.1} parent=1 // pred_fallthru
      _
    // Predicated region
    $region22: #{multimodal_forward.1} parent=1 // pred_check
      _
    $region23: #{multimodal_forward.1} parent=1 // pred_check_branch
      %33 = sbr.rel (0) target = $region25
    $region24: #{multimodal_forward.1} parent=1 // pred_region
      _
    $region25: #{multimodal_forward.1} parent=1 // pred_fallthru
      _
    // Predicated region
    $region26: #{multimodal_forward.1} parent=1 // pred_check
      _
    $region27: #{multimodal_forward.1} parent=1 // pred_check_branch
      %35 = sbr.rel (0) target = $region29
    $region28: #{multimodal_forward.1} parent=1 // pred_region
      _
    $region29: #{multimodal_forward.1} parent=1 // pred_fallthru
      _
    // Predicated region
    $region30: #{multimodal_forward.1} parent=1 // pred_check
      _
    $region31: #{multimodal_forward.1} parent=1 // pred_check_branch
      %37 = sbr.rel (0) target = $region33
    $region32: #{multimodal_forward.1} parent=1 // pred_region
      _
    $region33: #{multimodal_forward.1} parent=1 // pred_fallthru
      _
    // Predicated region
    $region34: #{multimodal_forward.1} parent=1 // pred_check
      _
    $region35: #{multimodal_forward.1} parent=1 // pred_check_branch
      %39 = sbr.rel (0) target = $region37
    $region36: #{multimodal_forward.1} parent=1 // pred_region
      _
    $region37: #{multimodal_forward.1} parent=1 // pred_fallthru
      _
    // Predicated region
    $region38: #{multimodal_forward.1} parent=1 // pred_check
      _
    $region39: #{multimodal_forward.1} parent=1 // pred_check_branch
      %41 = sbr.rel (0) target = $region41
    $region40: #{multimodal_forward.1} parent=1 // pred_region
      _
    $region41: #{multimodal_forward.1} parent=1 // pred_fallthru
      _
    // Predicated region
    $region42: #{multimodal_forward.1} parent=1 // pred_check
      _
    $region43: #{multimodal_forward.1} parent=1 // pred_check_branch
      %43 = sbr.rel (0) target = $region45
    $region44: #{multimodal_forward.1} parent=1 // pred_region
      _
    $region45: #{multimodal_forward.1} parent=1 // pred_fallthru
      _
    // Predicated region
    $region46: #{multimodal_forward.1} parent=1 // pred_check
      _
    $region47: #{multimodal_forward.1} parent=1 // pred_check_branch
      %45 = sbr.rel (0) target = $region49
    $region48: #{multimodal_forward.1} parent=1 // pred_region
      _
    $region49: #{multimodal_forward.1} parent=1 // pred_fallthru
      _
    // Predicated region
    $region50: #{multimodal_forward.1} parent=1 // pred_check
      _
    $region51: #{multimodal_forward.1} parent=1 // pred_check_branch
      %47 = sbr.rel (0) target = $region53
    $region52: #{multimodal_forward.1} parent=1 // pred_region
      _
    $region53: #{multimodal_forward.1} parent=1 // pred_fallthru
      _
    // Predicated region
    $region54: #{multimodal_forward.1} parent=1 // pred_check
      _
    $region55: #{multimodal_forward.1} parent=1 // pred_check_branch
      %49 = sbr.rel (0) target = $region57
    $region56: #{multimodal_forward.1} parent=1 // pred_region
      _
    $region57: #{multimodal_forward.1} parent=1 // pred_fallthru
      _
    // Predicated region
    $region58: #{multimodal_forward.1} parent=1 // pred_check
      _
    $region59: #{multimodal_forward.1} parent=1 // pred_check_branch
      %51 = sbr.rel (0) target = $region61
    $region60: #{multimodal_forward.1} parent=1 // pred_region
      _
    $region61: #{multimodal_forward.1} parent=1 // pred_fallthru
      _
    // Predicated region
    $region62: #{multimodal_forward.1} parent=1 // pred_check
      _
    $region63: #{multimodal_forward.1} parent=1 // pred_check_branch
      %53 = sbr.rel (0) target = $region65
    $region64: #{multimodal_forward.1} parent=1 // pred_region
      %s55 = ssub.s32 16, 16
      %56 = vsyncadd [#allocation3], %s55
      %s58 = sshll.u32 %s15, 4
      %s59 = int_to_ptr.vmem [resolvable:$true] %s58
      %61 = dma.vmem_to_smem %s59, 16, [#allocation2], [#allocation3]
    $region65: #{multimodal_forward.1} parent=1 // pred_fallthru
      _
    // Predicated region
    $region66: #{multimodal_forward.1} parent=1 // pred_check
      _
    $region67: #{multimodal_forward.1} parent=1 // pred_check_branch
      %63 = sbr.rel (0) target = $region69
    $region68: #{multimodal_forward.1} parent=1 // pred_region
      %64 = dma.done [#allocation3], 16
    $region69: #{multimodal_forward.1} parent=1 // pred_fallthru
      _
    %65 = sfence
    %v66 = vld [vmem:[%s6] sm:$0xff]
    %v67 = vld [vmem:[%s0] sm:$0xff]
    %v68 = vld [vmem:[%s0 + $0x8] sm:$0xf]
    %v69 = vld [vmem:[%s7] sm:$0xff]
    %71 = vset.pattern.permute.xlu0 0
    %72 = vperm.xlu0 %71, %v69
    %v73 = vpop.permute.xlu0 %72
    %vm75 = vcmask 97280
    %v77 = vsel %vm75, %v66, 0
    %vm79 = vcmask 1043456
    %v81 = vsel %vm79, %v68, 0
    %83 = vmatprep.subr.mxu0 0.0
    %84 = vmatpush1.msra.mxu0 %v67
    %85 = vmatprep.subr.mxu0 0.0
    %86 = vmatpush1.msra.mxu0 %v81
    %87 = vmatprep.subr.mxu0 0.0
    %88 = vmatpush1.msra.mxu0 0.0
    %89 = vmatprep.subr.mxu0 0.0
    %90 = vmatpush1.msra.mxu0 0.0
    %91 = vmatprep.subr.mxu0 0.0
    %92 = vmatpush1.msra.mxu0 0.0
    %93 = vmatprep.subr.mxu0 0.0
    %94 = vmatpush1.msra.mxu0 0.0
    %95 = vmatprep.subr.mxu0 0.0
    %96 = vmatpush1.msra.mxu0 0.0
    %97 = vmatprep.subr.mxu0 0.0
    %98 = vmatpush1.msra.mxu0 0.0
    %99 = vmatprep.subr.mxu0 0.0
    %100 = vmatpush1.msra.mxu0 0.0
    %101 = vmatprep.subr.mxu0 0.0
    %102 = vmatpush1.msra.mxu0 0.0
    %103 = vmatprep.subr.mxu0 0.0
    %104 = vmatpush1.msra.mxu0 0.0
    %105 = vmatprep.subr.mxu0 0.0
    %106 = vmatpush1.msra.mxu0 0.0
    %107 = vmatprep.subr.mxu0 0.0
    %108 = vmatpush1.msra.mxu0 0.0
    %109 = vmatprep.subr.mxu0 0.0
    %110 = vmatpush1.msra.mxu0 0.0
    %111 = vmatprep.subr.mxu0 0.0
    %112 = vmatpush1.msra.mxu0 0.0
    %113 = vmatprep.subr.mxu0 0.0
    %114 = vmatpush1.msra.mxu0 0.0
    %115 = vmatprep.subr.mxu0 0.0
    %116 = vmatpush1.msra.mxu0 0.0
    %117 = vmatprep.subr.mxu0 0.0
    %118 = vmatpush1.msra.mxu0 0.0
    %119 = vmatprep.subr.mxu0 0.0
    %120 = vmatpush1.msra.mxu0 0.0
    %121 = vmatprep.subr.mxu0 0.0
    %122 = vmatpush1.msra.mxu0 0.0
    %123 = vmatprep.subr.mxu0 0.0
    %124 = vmatpush1.msra.mxu0 0.0
    %125 = vmatprep.subr.mxu0 0.0
    %126 = vmatpush1.msra.mxu0 0.0
    %127 = vmatprep.subr.mxu0 0.0
    %128 = vmatpush1.msra.mxu0 0.0
    %129 = vmatprep.subr.mxu0 0.0
    %130 = vmatpush1.msra.mxu0 0.0
    %131 = vmatprep.subr.mxu0 0.0
    %132 = vmatpush1.msra.mxu0 0.0
    %133 = vmatprep.subr.mxu0 0.0
    %134 = vmatpush1.msra.mxu0 0.0
    %135 = vmatprep.subr.mxu0 0.0
    %136 = vmatpush1.msra.mxu0 0.0
    %137 = vmatprep.subr.mxu0 0.0
    %138 = vmatpush1.msra.mxu0 0.0
    %139 = vmatprep.subr.mxu0 0.0
    %140 = vmatpush1.msra.mxu0 0.0
    %141 = vmatprep.subr.mxu0 0.0
    %142 = vmatpush1.msra.mxu0 0.0
    %143 = vmatprep.subr.mxu0 0.0
    %144 = vmatpush1.msra.mxu0 0.0
    %145 = vmatprep.subr.mxu0 0.0
    %146 = vmatpush1.msra.mxu0 0.0
    %147 = vmatprep.mubr.f32.mxu0 0.0
    %148 = vmatmul.mubr.f32.gmra.mrb[0].mxu0 %v77
    %v149 = vpop.f32.mrb[0].mxu0
    %v150 = vadd.f32 %v73, %v149
    %v151 = vpop.f32.mrb[0].mxu0
    %152 = vdwg.mxu0
    %v153 = vmax.f32 %v150, 0.0
    %v154 = vld [vmem:[%s4] sm:$0xff]
    %vm155 = vcmask 261120
    %v157 = vsel %vm155, %v154, 0
    %v160 = vsel %vm155, %v153, 0
    %162 = vmatprep.subr.mxu0 0.0
    %163 = vmatpush1.xpose.msra.mxu0 %v160
    %164 = vmatprep.subr.mxu0 0.0
    %165 = vmatpush1.xpose.msra.mxu0 0.0
    %166 = vmatprep.subr.mxu0 0.0
    %167 = vmatpush1.xpose.msra.mxu0 0.0
    %168 = vmatprep.subr.mxu0 0.0
    %169 = vmatpush1.xpose.msra.mxu0 0.0
    %170 = vmatprep.subr.mxu0 0.0
    %171 = vmatpush1.xpose.msra.mxu0 0.0
    %172 = vmatprep.subr.mxu0 0.0
    %173 = vmatpush1.xpose.msra.mxu0 0.0
    %174 = vmatprep.subr.mxu0 0.0
    %175 = vmatpush1.xpose.msra.mxu0 0.0
    %176 = vmatprep.subr.mxu0 0.0
    %177 = vmatpush1.xpose.msra.mxu0 0.0
    %178 = vmatprep.subr.mxu0 0.0
    %179 = vmatpush1.xpose.msra.mxu0 0.0
    %180 = vmatprep.subr.mxu0 0.0
    %181 = vmatpush1.xpose.msra.mxu0 0.0
    %182 = vmatprep.subr.mxu0 0.0
    %183 = vmatpush1.xpose.msra.mxu0 0.0
    %184 = vmatprep.subr.mxu0 0.0
    %185 = vmatpush1.xpose.msra.mxu0 0.0
    %186 = vmatprep.subr.mxu0 0.0
    %187 = vmatpush1.xpose.msra.mxu0 0.0
    %188 = vmatprep.subr.mxu0 0.0
    %189 = vmatpush1.xpose.msra.mxu0 0.0
    %190 = vmatprep.subr.mxu0 0.0
    %191 = vmatpush1.xpose.msra.mxu0 0.0
    %192 = vmatprep.subr.mxu0 0.0
    %193 = vmatpush1.xpose.msra.mxu0 0.0
    %194 = vmatprep.subr.mxu0 0.0
    %195 = vmatpush1.xpose.msra.mxu0 0.0
    %196 = vmatprep.subr.mxu0 0.0
    %197 = vmatpush1.xpose.msra.mxu0 0.0
    %198 = vmatprep.subr.mxu0 0.0
    %199 = vmatpush1.xpose.msra.mxu0 0.0
    %200 = vmatprep.subr.mxu0 0.0
    %201 = vmatpush1.xpose.msra.mxu0 0.0
    %202 = vmatprep.subr.mxu0 0.0
    %203 = vmatpush1.xpose.msra.mxu0 0.0
    %204 = vmatprep.subr.mxu0 0.0
    %205 = vmatpush1.xpose.msra.mxu0 0.0
    %206 = vmatprep.subr.mxu0 0.0
    %207 = vmatpush1.xpose.msra.mxu0 0.0
    %208 = vmatprep.subr.mxu0 0.0
    %209 = vmatpush1.xpose.msra.mxu0 0.0
    %210 = vmatprep.subr.mxu0 0.0
    %211 = vmatpush1.xpose.msra.mxu0 0.0
    %212 = vmatprep.subr.mxu0 0.0
    %213 = vmatpush1.xpose.msra.mxu0 0.0
    %214 = vmatprep.subr.mxu0 0.0
    %215 = vmatpush1.xpose.msra.mxu0 0.0
    %216 = vmatprep.subr.mxu0 0.0
    %217 = vmatpush1.xpose.msra.mxu0 0.0
    %218 = vmatprep.subr.mxu0 0.0
    %219 = vmatpush1.xpose.msra.mxu0 0.0
    %220 = vmatprep.subr.mxu0 0.0
    %221 = vmatpush1.xpose.msra.mxu0 0.0
    %222 = vmatprep.subr.mxu0 0.0
    %223 = vmatpush1.xpose.msra.mxu0 0.0
    %224 = vmatprep.subr.mxu0 0.0
    %225 = vmatpush1.xpose.msra.mxu0 0.0
    %226 = vmatprep.mubr.f32.mxu0 0.0
    %227 = vmatmul.mubr.f32.gmra.mrb[0].mxu0 %v157
    %v228 = vpop.f32.mrb[0].mxu0
    %v229 = vadd.f32 0.0, %v228
    %v230 = vpop.f32.mrb[0].mxu0
    %231 = vdwg.mxu0
    %v232 = vld [vmem:[%s10] sm:$0x1]
    %v234 = vlaneseq
    %v235 = vshrl.u32 %v234, 7
    %v236 = vsub.s32 0, %v235
    %v237 = vrot.slane %v232, %v236
    %v239 = vmul.f32 %v229, %v237
    %vm240 = vcmask 64512
    %v241 = vsel %vm240, %v239, 0.0
    %242 = vadd.xlane.f32.xlu0 %v241
    %v243 = vpop.xlane.xlu0 %242
    %s244 = sld [smem:[#allocation2 + $0x5]]
    %v245 = vstv %s244
    %v246 = vadd.f32 %v243, %v245
    %v247 = vld [vmem:[%s8] sm:$0xff]
    %v248 = vld [vmem:[%s1] sm:$0xff]
    %v249 = vld [vmem:[%s1 + $0x8] sm:$0xff]
    %v250 = vld [vmem:[%s1 + $0x10] sm:$0xff]
    %v251 = vld [vmem:[%s1 + $0x18] sm:$0xff]
    %v252 = vld [vmem:[%s1 + $0x20] sm:$0xff]
    %v253 = vld [vmem:[%s1 + $0x28] sm:$0xff]
    %v254 = vld [vmem:[%s1 + $0x30] sm:$0xff]
    %v255 = vld [vmem:[%s1 + $0x38] sm:$0xff]
    %v256 = vld [vmem:[%s1 + $0x40] sm:$0xff]
    %v257 = vld [vmem:[%s1 + $0x48] sm:$0xff]
    %v258 = vld [vmem:[%s1 + $0x50] sm:$0xff]
    %v259 = vld [vmem:[%s1 + $0x58] sm:$0xff]
    %v260 = vld [vmem:[%s1 + $0x60] sm:$0xff]
    %v261 = vld [vmem:[%s1 + $0x68] sm:$0xff]
    %v262 = vld [vmem:[%s1 + $0x70] sm:$0xff]
    %v263 = vld [vmem:[%s1 + $0x78] sm:$0xff]
    %v264 = vld [vmem:[%s1 + $0x80] sm:$0xf]
    %v265 = vld [vmem:[%s1 + $0x88] sm:$0xf]
    %v266 = vld [vmem:[%s1 + $0x90] sm:$0xf]
    %v267 = vld [vmem:[%s1 + $0x98] sm:$0xf]
    %v268 = vld [vmem:[%s9] sm:$0xff]
    %270 = vset.pattern.permute.xlu0 0
    %271 = vperm.xlu0 %270, %v268
    %v272 = vpop.permute.xlu0 %271
    %vm274 = vcmask 293888
    %v276 = vsel %vm274, %v247, 0
    %v279 = vsel %vm79, %v264, 0
    %v282 = vsel %vm79, %v265, 0
    %v285 = vsel %vm79, %v266, 0
    %v288 = vsel %vm79, %v267, 0
    %290 = vmatprep.subr.mxu0 %v249
    %291 = vmatpush1.msra.mxu0 %v248
    %292 = vmatprep.subr.mxu0 %v253
    %293 = vmatpush1.msra.mxu0 %v252
    %294 = vmatprep.subr.mxu0 %v257
    %295 = vmatpush1.msra.mxu0 %v256
    %296 = vmatprep.subr.mxu0 %v261
    %297 = vmatpush1.msra.mxu0 %v260
    %298 = vmatprep.subr.mxu0 %v282
    %299 = vmatpush1.msra.mxu0 %v279
    %300 = vmatprep.subr.mxu0 0.0
    %301 = vmatpush1.msra.mxu0 0.0
    %302 = vmatprep.subr.mxu0 0.0
    %303 = vmatpush1.msra.mxu0 0.0
    %304 = vmatprep.subr.mxu0 0.0
    %305 = vmatpush1.msra.mxu0 0.0
    %306 = vmatprep.subr.mxu0 0.0
    %307 = vmatpush1.msra.mxu0 0.0
    %308 = vmatprep.subr.mxu0 0.0
    %309 = vmatpush1.msra.mxu0 0.0
    %310 = vmatprep.subr.mxu0 0.0
    %311 = vmatpush1.msra.mxu0 0.0
    %312 = vmatprep.subr.mxu0 0.0
    %313 = vmatpush1.msra.mxu0 0.0
    %314 = vmatprep.subr.mxu0 0.0
    %315 = vmatpush1.msra.mxu0 0.0
    %316 = vmatprep.subr.mxu0 0.0
    %317 = vmatpush1.msra.mxu0 0.0
    %318 = vmatprep.subr.mxu0 0.0
    %319 = vmatpush1.msra.mxu0 0.0
    %320 = vmatprep.subr.mxu0 0.0
    %321 = vmatpush1.msra.mxu0 0.0
    %322 = vmatprep.subr.mxu0 0.0
    %323 = vmatpush1.msra.mxu0 0.0
    %324 = vmatprep.subr.mxu0 0.0
    %325 = vmatpush1.msra.mxu0 0.0
    %326 = vmatprep.subr.mxu0 0.0
    %327 = vmatpush1.msra.mxu0 0.0
    %328 = vmatprep.subr.mxu0 0.0
    %329 = vmatpush1.msra.mxu0 0.0
    %330 = vmatprep.subr.mxu0 0.0
    %331 = vmatpush1.msra.mxu0 0.0
    %332 = vmatprep.subr.mxu0 0.0
    %333 = vmatpush1.msra.mxu0 0.0
    %334 = vmatprep.subr.mxu0 0.0
    %335 = vmatpush1.msra.mxu0 0.0
    %336 = vmatprep.subr.mxu0 0.0
    %337 = vmatpush1.msra.mxu0 0.0
    %338 = vmatprep.subr.mxu0 0.0
    %339 = vmatpush1.msra.mxu0 0.0
    %340 = vmatprep.subr.mxu0 0.0
    %341 = vmatpush1.msra.mxu0 0.0
    %342 = vmatprep.subr.mxu0 0.0
    %343 = vmatpush1.msra.mxu0 0.0
    %344 = vmatprep.subr.mxu0 0.0
    %345 = vmatpush1.msra.mxu0 0.0
    %346 = vmatprep.subr.mxu0 0.0
    %347 = vmatpush1.msra.mxu0 0.0
    %348 = vmatprep.subr.mxu0 0.0
    %349 = vmatpush1.msra.mxu0 0.0
    %350 = vmatprep.subr.mxu0 0.0
    %351 = vmatpush1.msra.mxu0 0.0
    %352 = vmatprep.subr.mxu0 0.0
    %353 = vmatpush1.msra.mxu0 0.0
    %354 = vmatprep.mubr.f32.mxu0 0.0
    %355 = vmatmul.mubr.f32.gmra.mrb[0].mxu0 %v276
    %v356 = vpop.f32.mrb[0].mxu0
    %v357 = vadd.f32 %v272, %v356
    %v358 = vpop.f32.mrb[0].mxu0
    %v359 = vadd.f32 %v272, %v358
    %360 = vdwg.mxu0
    %361 = vmatprep.subr.mxu0 %v251
    %362 = vmatpush1.msra.mxu0 %v250
    %363 = vmatprep.subr.mxu0 %v255
    %364 = vmatpush1.msra.mxu0 %v254
    %365 = vmatprep.subr.mxu0 %v259
    %366 = vmatpush1.msra.mxu0 %v258
    %367 = vmatprep.subr.mxu0 %v263
    %368 = vmatpush1.msra.mxu0 %v262
    %369 = vmatprep.subr.mxu0 %v288
    %370 = vmatpush1.msra.mxu0 %v285
    %371 = vmatprep.subr.mxu0 0.0
    %372 = vmatpush1.msra.mxu0 0.0
    %373 = vmatprep.subr.mxu0 0.0
    %374 = vmatpush1.msra.mxu0 0.0
    %375 = vmatprep.subr.mxu0 0.0
    %376 = vmatpush1.msra.mxu0 0.0
    %377 = vmatprep.subr.mxu0 0.0
    %378 = vmatpush1.msra.mxu0 0.0
    %379 = vmatprep.subr.mxu0 0.0
    %380 = vmatpush1.msra.mxu0 0.0
    %381 = vmatprep.subr.mxu0 0.0
    %382 = vmatpush1.msra.mxu0 0.0
    %383 = vmatprep.subr.mxu0 0.0
    %384 = vmatpush1.msra.mxu0 0.0
    %385 = vmatprep.subr.mxu0 0.0
    %386 = vmatpush1.msra.mxu0 0.0
    %387 = vmatprep.subr.mxu0 0.0
    %388 = vmatpush1.msra.mxu0 0.0
    %389 = vmatprep.subr.mxu0 0.0
    %390 = vmatpush1.msra.mxu0 0.0
    %391 = vmatprep.subr.mxu0 0.0
    %392 = vmatpush1.msra.mxu0 0.0
    %393 = vmatprep.subr.mxu0 0.0
    %394 = vmatpush1.msra.mxu0 0.0
    %395 = vmatprep.subr.mxu0 0.0
    %396 = vmatpush1.msra.mxu0 0.0
    %397 = vmatprep.subr.mxu0 0.0
    %398 = vmatpush1.msra.mxu0 0.0
    %399 = vmatprep.subr.mxu0 0.0
    %400 = vmatpush1.msra.mxu0 0.0
    %401 = vmatprep.subr.mxu0 0.0
    %402 = vmatpush1.msra.mxu0 0.0
    %403 = vmatprep.subr.mxu0 0.0
    %404 = vmatpush1.msra.mxu0 0.0
    %405 = vmatprep.subr.mxu0 0.0
    %406 = vmatpush1.msra.mxu0 0.0
    %407 = vmatprep.subr.mxu0 0.0
    %408 = vmatpush1.msra.mxu0 0.0
    %409 = vmatprep.subr.mxu0 0.0
    %410 = vmatpush1.msra.mxu0 0.0
    %411 = vmatprep.subr.mxu0 0.0
    %412 = vmatpush1.msra.mxu0 0.0
    %413 = vmatprep.subr.mxu0 0.0
    %414 = vmatpush1.msra.mxu0 0.0
    %415 = vmatprep.subr.mxu0 0.0
    %416 = vmatpush1.msra.mxu0 0.0
    %417 = vmatprep.subr.mxu0 0.0
    %418 = vmatpush1.msra.mxu0 0.0
    %419 = vmatprep.subr.mxu0 0.0
    %420 = vmatpush1.msra.mxu0 0.0
    %421 = vmatprep.subr.mxu0 0.0
    %422 = vmatpush1.msra.mxu0 0.0
    %423 = vmatprep.subr.mxu0 0.0
    %424 = vmatpush1.msra.mxu0 0.0
    %425 = vmatprep.mubr.f32.mxu0 0.0
    %426 = vmatmul.mubr.f32.gmra.mrb[0].mxu0 %v276
    %v427 = vpop.f32.mrb[0].mxu0
    %v428 = vadd.f32 %v272, %v427
    %v429 = vpop.f32.mrb[0].mxu0
    %v430 = vadd.f32 %v272, %v429
    %431 = vdwg.mxu0
    %v432 = vmax.f32 %v357, 0.0
    %v433 = vmax.f32 %v359, 0.0
    %v434 = vmax.f32 %v428, 0.0
    %v435 = vmax.f32 %v430, 0.0
    %v436 = vld [vmem:[%s5] sm:$0xff]
    %v437 = vld [vmem:[%s5 + $0x8] sm:$0xff]
    %v438 = vld [vmem:[%s5 + $0x10] sm:$0xff]
    %v439 = vld [vmem:[%s5 + $0x18] sm:$0xff]
    %440 = vmatprep.subr.mxu0 %v433
    %441 = vmatpush1.xpose.msra.mxu0 %v432
    %442 = vmatprep.subr.mxu0 0.0
    %443 = vmatpush1.xpose.msra.mxu0 0.0
    %444 = vmatprep.subr.mxu0 0.0
    %445 = vmatpush1.xpose.msra.mxu0 0.0
    %446 = vmatprep.subr.mxu0 0.0
    %447 = vmatpush1.xpose.msra.mxu0 0.0
    %448 = vmatprep.subr.mxu0 0.0
    %449 = vmatpush1.xpose.msra.mxu0 0.0
    %450 = vmatprep.subr.mxu0 0.0
    %451 = vmatpush1.xpose.msra.mxu0 0.0
    %452 = vmatprep.subr.mxu0 0.0
    %453 = vmatpush1.xpose.msra.mxu0 0.0
    %454 = vmatprep.subr.mxu0 0.0
    %455 = vmatpush1.xpose.msra.mxu0 0.0
    %456 = vmatprep.subr.mxu0 0.0
    %457 = vmatpush1.xpose.msra.mxu0 0.0
    %458 = vmatprep.subr.mxu0 0.0
    %459 = vmatpush1.xpose.msra.mxu0 0.0
    %460 = vmatprep.subr.mxu0 0.0
    %461 = vmatpush1.xpose.msra.mxu0 0.0
    %462 = vmatprep.subr.mxu0 0.0
    %463 = vmatpush1.xpose.msra.mxu0 0.0
    %464 = vmatprep.subr.mxu0 0.0
    %465 = vmatpush1.xpose.msra.mxu0 0.0
    %466 = vmatprep.subr.mxu0 0.0
    %467 = vmatpush1.xpose.msra.mxu0 0.0
    %468 = vmatprep.subr.mxu0 0.0
    %469 = vmatpush1.xpose.msra.mxu0 0.0
    %470 = vmatprep.subr.mxu0 0.0
    %471 = vmatpush1.xpose.msra.mxu0 0.0
    %472 = vmatprep.subr.mxu0 0.0
    %473 = vmatpush1.xpose.msra.mxu0 0.0
    %474 = vmatprep.subr.mxu0 0.0
    %475 = vmatpush1.xpose.msra.mxu0 0.0
    %476 = vmatprep.subr.mxu0 0.0
    %477 = vmatpush1.xpose.msra.mxu0 0.0
    %478 = vmatprep.subr.mxu0 0.0
    %479 = vmatpush1.xpose.msra.mxu0 0.0
    %480 = vmatprep.subr.mxu0 0.0
    %481 = vmatpush1.xpose.msra.mxu0 0.0
    %482 = vmatprep.subr.mxu0 0.0
    %483 = vmatpush1.xpose.msra.mxu0 0.0
    %484 = vmatprep.subr.mxu0 0.0
    %485 = vmatpush1.xpose.msra.mxu0 0.0
    %486 = vmatprep.subr.mxu0 0.0
    %487 = vmatpush1.xpose.msra.mxu0 0.0
    %488 = vmatprep.subr.mxu0 0.0
    %489 = vmatpush1.xpose.msra.mxu0 0.0
    %490 = vmatprep.subr.mxu0 0.0
    %491 = vmatpush1.xpose.msra.mxu0 0.0
    %492 = vmatprep.subr.mxu0 0.0
    %493 = vmatpush1.xpose.msra.mxu0 0.0
    %494 = vmatprep.subr.mxu0 0.0
    %495 = vmatpush1.xpose.msra.mxu0 0.0
    %496 = vmatprep.subr.mxu0 0.0
    %497 = vmatpush1.xpose.msra.mxu0 0.0
    %498 = vmatprep.subr.mxu0 0.0
    %499 = vmatpush1.xpose.msra.mxu0 0.0
    %500 = vmatprep.subr.mxu0 0.0
    %501 = vmatpush1.xpose.msra.mxu0 0.0
    %502 = vmatprep.subr.mxu0 0.0
    %503 = vmatpush1.xpose.msra.mxu0 0.0
    %504 = vmatprep.mubr.f32.mxu0 %v437
    %505 = vmatmul.mubr.f32.gmra.mrb[0].mxu0 %v436
    %v506 = vpop.f32.mrb[0].mxu0
    %v507 = vadd.f32 0.0, %v506
    %v508 = vpop.f32.mrb[0].mxu0
    %509 = vdwg.mxu0
    %510 = vmatprep.subr.mxu0 %v435
    %511 = vmatpush1.xpose.msra.mxu0 %v434
    %512 = vmatprep.subr.mxu0 0.0
    %513 = vmatpush1.xpose.msra.mxu0 0.0
    %514 = vmatprep.subr.mxu0 0.0
    %515 = vmatpush1.xpose.msra.mxu0 0.0
    %516 = vmatprep.subr.mxu0 0.0
    %517 = vmatpush1.xpose.msra.mxu0 0.0
    %518 = vmatprep.subr.mxu0 0.0
    %519 = vmatpush1.xpose.msra.mxu0 0.0
    %520 = vmatprep.subr.mxu0 0.0
    %521 = vmatpush1.xpose.msra.mxu0 0.0
    %522 = vmatprep.subr.mxu0 0.0
    %523 = vmatpush1.xpose.msra.mxu0 0.0
    %524 = vmatprep.subr.mxu0 0.0
    %525 = vmatpush1.xpose.msra.mxu0 0.0
    %526 = vmatprep.subr.mxu0 0.0
    %527 = vmatpush1.xpose.msra.mxu0 0.0
    %528 = vmatprep.subr.mxu0 0.0
    %529 = vmatpush1.xpose.msra.mxu0 0.0
    %530 = vmatprep.subr.mxu0 0.0
    %531 = vmatpush1.xpose.msra.mxu0 0.0
    %532 = vmatprep.subr.mxu0 0.0
    %533 = vmatpush1.xpose.msra.mxu0 0.0
    %534 = vmatprep.subr.mxu0 0.0
    %535 = vmatpush1.xpose.msra.mxu0 0.0
    %536 = vmatprep.subr.mxu0 0.0
    %537 = vmatpush1.xpose.msra.mxu0 0.0
    %538 = vmatprep.subr.mxu0 0.0
    %539 = vmatpush1.xpose.msra.mxu0 0.0
    %540 = vmatprep.subr.mxu0 0.0
    %541 = vmatpush1.xpose.msra.mxu0 0.0
    %542 = vmatprep.subr.mxu0 0.0
    %543 = vmatpush1.xpose.msra.mxu0 0.0
    %544 = vmatprep.subr.mxu0 0.0
    %545 = vmatpush1.xpose.msra.mxu0 0.0
    %546 = vmatprep.subr.mxu0 0.0
    %547 = vmatpush1.xpose.msra.mxu0 0.0
    %548 = vmatprep.subr.mxu0 0.0
    %549 = vmatpush1.xpose.msra.mxu0 0.0
    %550 = vmatprep.subr.mxu0 0.0
    %551 = vmatpush1.xpose.msra.mxu0 0.0
    %552 = vmatprep.subr.mxu0 0.0
    %553 = vmatpush1.xpose.msra.mxu0 0.0
    %554 = vmatprep.subr.mxu0 0.0
    %555 = vmatpush1.xpose.msra.mxu0 0.0
    %556 = vmatprep.subr.mxu0 0.0
    %557 = vmatpush1.xpose.msra.mxu0 0.0
    %558 = vmatprep.subr.mxu0 0.0
    %559 = vmatpush1.xpose.msra.mxu0 0.0
    %560 = vmatprep.subr.mxu0 0.0
    %561 = vmatpush1.xpose.msra.mxu0 0.0
    %562 = vmatprep.subr.mxu0 0.0
    %563 = vmatpush1.xpose.msra.mxu0 0.0
    %564 = vmatprep.subr.mxu0 0.0
    %565 = vmatpush1.xpose.msra.mxu0 0.0
    %566 = vmatprep.subr.mxu0 0.0
    %567 = vmatpush1.xpose.msra.mxu0 0.0
    %568 = vmatprep.subr.mxu0 0.0
    %569 = vmatpush1.xpose.msra.mxu0 0.0
    %570 = vmatprep.subr.mxu0 0.0
    %571 = vmatpush1.xpose.msra.mxu0 0.0
    %572 = vmatprep.subr.mxu0 0.0
    %573 = vmatpush1.xpose.msra.mxu0 0.0
    %574 = vmatprep.mubr.f32.mxu0 %v439
    %575 = vmatmul.mubr.f32.gmra.mrb[0].mxu0 %v438
    %v576 = vpop.f32.mrb[0].mxu0
    %v577 = vadd.f32 %v507, %v576
    %v578 = vpop.f32.mrb[0].mxu0
    %579 = vdwg.mxu0
    %v580 = vld [vmem:[%s11] sm:$0x1]
    %v582 = vlaneseq
    %v583 = vshrl.u32 %v582, 7
    %v584 = vsub.s32 0, %v583
    %v585 = vrot.slane %v580, %v584
    %v587 = vmul.f32 %v577, %v585
    %v588 = vsel %vm240, %v587, 0.0
    %589 = vadd.xlane.f32.xlu0 %v588
    %v590 = vpop.xlane.xlu0 %589
    %s591 = sld [smem:[#allocation2 + $0x6]]
    %v592 = vstv %s591
    %v593 = vadd.f32 %v590, %v592
    %v594 = vld [vmem:[%s2] sm:$0xff]
    %v595 = vld [vmem:[%s12] sm:$0xff]
    %v596 = vld [vmem:[%s12 + $0x8] sm:$0xff]
    %v597 = vld [vmem:[%s12 + $0x10] sm:$0xff]
    %v598 = vld [vmem:[%s12 + $0x18] sm:$0xff]
    %v599 = vld [vmem:[%s12 + $0x20] sm:$0xff]
    %v600 = vld [vmem:[%s12 + $0x28] sm:$0xff]
    %v601 = vld [vmem:[%s12 + $0x30] sm:$0xff]
    %v602 = vld [vmem:[%s12 + $0x38] sm:$0xff]
    %v603 = vld [vmem:[%s12 + $0x40] sm:$0x1]
    %v604 = vld [vmem:[%s13] sm:$0x1]
    %v606 = vlaneseq
    %v607 = vshrl.u32 %v606, 7
    %v608 = vsub.s32 0, %v607
    %v609 = vrot.slane %v604, %v608
    %vm611 = vcmask 531456
    %v613 = vsel %vm611, %v594, 0
    %vm615 = vcmask 1040384
    %v617 = vsel %vm615, %v603, 0
    %619 = vmatprep.subr.mxu0 0.0
    %620 = vmatpush1.msra.mxu0 %v595
    %621 = vmatprep.subr.mxu0 0.0
    %622 = vmatpush1.msra.mxu0 %v596
    %623 = vmatprep.subr.mxu0 0.0
    %624 = vmatpush1.msra.mxu0 %v597
    %625 = vmatprep.subr.mxu0 0.0
    %626 = vmatpush1.msra.mxu0 %v598
    %627 = vmatprep.subr.mxu0 0.0
    %628 = vmatpush1.msra.mxu0 %v599
    %629 = vmatprep.subr.mxu0 0.0
    %630 = vmatpush1.msra.mxu0 %v600
    %631 = vmatprep.subr.mxu0 0.0
    %632 = vmatpush1.msra.mxu0 %v601
    %633 = vmatprep.subr.mxu0 0.0
    %634 = vmatpush1.msra.mxu0 %v602
    %635 = vmatprep.subr.mxu0 0.0
    %636 = vmatpush1.msra.mxu0 %v617
    %637 = vmatprep.subr.mxu0 0.0
    %638 = vmatpush1.msra.mxu0 0.0
    %639 = vmatprep.subr.mxu0 0.0
    %640 = vmatpush1.msra.mxu0 0.0
    %641 = vmatprep.subr.mxu0 0.0
    %642 = vmatpush1.msra.mxu0 0.0
    %643 = vmatprep.subr.mxu0 0.0
    %644 = vmatpush1.msra.mxu0 0.0
    %645 = vmatprep.subr.mxu0 0.0
    %646 = vmatpush1.msra.mxu0 0.0
    %647 = vmatprep.subr.mxu0 0.0
    %648 = vmatpush1.msra.mxu0 0.0
    %649 = vmatprep.subr.mxu0 0.0
    %650 = vmatpush1.msra.mxu0 0.0
    %651 = vmatprep.subr.mxu0 0.0
    %652 = vmatpush1.msra.mxu0 0.0
    %653 = vmatprep.subr.mxu0 0.0
    %654 = vmatpush1.msra.mxu0 0.0
    %655 = vmatprep.subr.mxu0 0.0
    %656 = vmatpush1.msra.mxu0 0.0
    %657 = vmatprep.subr.mxu0 0.0
    %658 = vmatpush1.msra.mxu0 0.0
    %659 = vmatprep.subr.mxu0 0.0
    %660 = vmatpush1.msra.mxu0 0.0
    %661 = vmatprep.subr.mxu0 0.0
    %662 = vmatpush1.msra.mxu0 0.0
    %663 = vmatprep.subr.mxu0 0.0
    %664 = vmatpush1.msra.mxu0 0.0
    %665 = vmatprep.subr.mxu0 0.0
    %666 = vmatpush1.msra.mxu0 0.0
    %667 = vmatprep.subr.mxu0 0.0
    %668 = vmatpush1.msra.mxu0 0.0
    %669 = vmatprep.subr.mxu0 0.0
    %670 = vmatpush1.msra.mxu0 0.0
    %671 = vmatprep.subr.mxu0 0.0
    %672 = vmatpush1.msra.mxu0 0.0
    %673 = vmatprep.subr.mxu0 0.0
    %674 = vmatpush1.msra.mxu0 0.0
    %675 = vmatprep.subr.mxu0 0.0
    %676 = vmatpush1.msra.mxu0 0.0
    %677 = vmatprep.subr.mxu0 0.0
    %678 = vmatpush1.msra.mxu0 0.0
    %679 = vmatprep.subr.mxu0 0.0
    %680 = vmatpush1.msra.mxu0 0.0
    %681 = vmatprep.subr.mxu0 0.0
    %682 = vmatpush1.msra.mxu0 0.0
    %683 = vmatprep.mubr.f32.mxu0 0.0
    %684 = vmatmul.mubr.f32.gmra.mrb[0].mxu0 %v613
    %v685 = vpop.f32.mrb[0].mxu0
    %v686 = vadd.f32 %v609, %v685
    %v687 = vpop.f32.mrb[0].mxu0
    %688 = vdwg.mxu0
    %v689 = vmax.f32 %v686, 0.0
    %v690 = vld [vmem:[%s14] sm:$0x1]
    %v692 = vlaneseq
    %v693 = vshrl.u32 %v692, 7
    %v694 = vsub.s32 0, %v693
    %v695 = vrot.slane %v690, %v694
    %v697 = vmul.f32 %v689, %v695
    %v698 = vsel %vm155, %v697, 0.0
    %699 = vadd.xlane.f32.xlu0 %v698
    %v700 = vpop.xlane.xlu0 %699
    %s701 = sld [smem:[#allocation2 + $0x7]]
    %v702 = vstv %s701
    %v703 = vadd.f32 %v700, %v702
    %v704 = vld [vmem:[%s3] sm:$0xff]
    %s705 = sld [smem:[#allocation2]]
    %v706 = vstv %s705
    %v707 = vmul.f32 %v706, %v246
    %s708 = sld [smem:[#allocation2 + $0x1]]
    %v709 = vstv %s708
    %v710 = vmul.f32 %v709, %v593
    %v711 = vadd.f32 %v707, %v710
    %s712 = sld [smem:[#allocation2 + $0x2]]
    %v713 = vstv %s712
    %v714 = vmul.f32 %v713, %v703
    %v715 = vadd.f32 %v711, %v714
    %s716 = sld [smem:[#allocation2 + $0x3]]
    %v717 = vstv %s716
    %v718 = vmul.f32 %v717, %v704
    %v719 = vadd.f32 %v715, %v718
    %s720 = sld [smem:[#allocation2 + $0x4]]
    %v721 = vstv %s720
    %v722 = vadd.f32 %v719, %v721
    %v723 = vmax.f32 %v722, 0.0
    %725 = vset.pattern.permute.xlu0 0
    %726 = vperm.xlu0 %725, %v723
    %v727 = vpop.permute.xlu0 %726
    %729 = vst [vmem:[%s16] sm:$0xff] %v727
    // Predicated region
    $region70: #{multimodal_forward.1} parent=1 // pred_check
      _
    $region71: #{multimodal_forward.1} parent=1 // pred_check_branch
      %731 = sbr.rel (0) target = $region73
    $region72: #{multimodal_forward.1} parent=1 // pred_region
      _
    $region73: #{multimodal_forward.1} parent=1 // pred_fallthru
      _
    // Predicated region
    $region74: #{multimodal_forward.1} parent=1 // pred_check
      _
    $region75: #{multimodal_forward.1} parent=1 // pred_check_branch
      %733 = sbr.rel (0) target = $region77
    $region76: #{multimodal_forward.1} parent=1 // pred_region
      _
    $region77: #{multimodal_forward.1} parent=1 // pred_fallthru
      _
    %734 = vsyncpa [#allocation3], 1

</llo_original>
